<compile_context>
chip_gen: v7x
topology: tpu7x:2x2x1
jax: 0.10.0
libtpu: 0.0.40
codegen_flags: <defaults>
</compile_context>

<pallas_src>
import jax
import jax.numpy as jnp
from jax.experimental import pallas as pl
from jax.experimental.pallas import tpu as pltpu


def _make_topk_smoothing_kernel(k, uniform_weight, hard_weight, use_mxu_sums):
    uw_over_k = float(uniform_weight) / float(k)
    hw = float(hard_weight)

    def kernel(logits_ref, labels_ref, loss_ref):
        # logits_ref: (tile_m, V)  logits block, kept in its native dtype
        # labels_ref: (tile_m, 1)  int32 hard labels
        # loss_ref:   (tile_m, 1)  f32 per-row loss (reduction done in wrapper)
        x = logits_ref[...]
        tm, v = x.shape
        neg_inf = jnp.array(-jnp.inf, dtype=x.dtype)

        if use_mxu_sums:
            # Lane-axis sums on the (otherwise idle) MXU:
            # (tm, V) @ (V, 128) ones -> every lane holds the row sum; take lane 0.
            ones = jnp.ones((v, 128), jnp.float32)

            def lane_sum(a):
                return jnp.dot(a.astype(jnp.float32), ones,
                               preferred_element_type=jnp.float32)[:, :1]
        else:
            def lane_sum(a):
                return jnp.sum(a.astype(jnp.float32), axis=-1, keepdims=True)

        # ---- row max: shared by the LSE and by peel iteration 0 ------------
        m = jnp.max(x, axis=-1, keepdims=True)            # (tm, 1), input dtype
        m_f32 = m.astype(jnp.float32)

        # ---- stable log-sum-exp: only this path is upcast to f32 -----------
        p = jnp.exp(x.astype(jnp.float32) - m_f32)        # (tm, V) f32
        lse = m_f32 + jnp.log(lane_sum(p))

        # ---- duplicate-aware sum of the k largest logits --------------------
        # Carried-mask peel: eq is computed once per distinct value and reused
        # for the tie count and the next mask; per iteration this is one max,
        # one compare, one select (+ MXU count) over the vocab.
        remaining = jnp.full((tm, 1), float(k), jnp.float32)
        eq = x == m
        cnt = lane_sum(eq)
        take = jnp.minimum(cnt, remaining)
        topk_sum = take * m_f32                           # take >= 1 here
        remaining = remaining - take
        work = jnp.where(eq, neg_inf, x)
        # TODO(synk): for k >~ 8 replace this unrolled peel with lax.fori_loop
        # (or a threshold-search algorithm) and add vocab-axis chunking for
        # very large V.
        for it in range(1, k):
            nxt = jnp.max(work, axis=-1, keepdims=True)
            eq = work == nxt
            cnt = lane_sum(eq)
            take = jnp.minimum(cnt, remaining)
            nxt_f32 = nxt.astype(jnp.float32)
            # guard 0 * (-inf) once a row has already collected all k values
            topk_sum = topk_sum + jnp.where(take > 0.0, take * nxt_f32, 0.0)
            remaining = remaining - take
            if it != k - 1:                               # last mask update is dead
                work = jnp.where(eq, neg_inf, work)

        # ---- logit at the hard label ----------------------------------------
        # TODO(synk): a scalar-prefetch (SMEM) label gather would drop these two
        # full-vocab passes; kept as one-hot select + MXU sum for lowering
        # robustness.
        lbl = labels_ref[...]                              # (tm, 1) int32
        col = jax.lax.broadcasted_iota(jnp.int32, (tm, v), 1)
        x_label = lane_sum(jnp.where(col == lbl, x, jnp.zeros_like(x)))

        # uniform CE = lse - topk_sum/k ; hard CE = lse - x_label
        loss = lse - uw_over_k * topk_sum - hw * x_label
        loss_ref[...] = loss.astype(loss_ref.dtype)

    return kernel


def _round_up(x, m):
    return ((x + m - 1) // m) * m


def _vmem_budgets(block_budget_bytes, vmem_limit_bytes):
    """Per-generation budgets: v5e/v6e have 128 MiB VMEM, v7x only 64 MiB."""
    cap = None
    try:
        cap = int(getattr(pltpu.get_tpu_info(), "vmem_capacity_bytes", 0)) or None
    except Exception:
        cap = None
    if cap is not None and cap >= 96 * 1024 * 1024:
        # v5e / v6e: large tiles amortize the ~0.35us per-grid-step overhead.
        bb, vl = 8 * 1024 * 1024, 64 * 1024 * 1024
    elif cap is not None:
        # v7x: conservative tiles, leave headroom under 64 MiB physical VMEM.
        bb, vl = (7 * 1024 * 1024) // 2, min(48 * 1024 * 1024, (cap * 3) // 4)
    else:
        bb, vl = 4 * 1024 * 1024, 32 * 1024 * 1024
    if block_budget_bytes is None:
        block_budget_bytes = bb
    if vmem_limit_bytes is None:
        vmem_limit_bytes = vl
    return int(block_budget_bytes), int(vmem_limit_bytes)


def _choose_tile_m(n_rows, vocab, row_multiple, block_budget_bytes):
    """Row tile sized against the dominant (tile_m, V) f32 temporaries of the
    peel loop (independent of the input dtype), rounded to the sublane packing
    multiple, and arranged to give >= 2 grid steps when possible (v7x has two
    TensorCores sharing the 'parallel' axis)."""
    rows = block_budget_bytes // max(1, vocab * 4)
    rows = max(row_multiple, (rows // row_multiple) * row_multiple)
    rows = min(rows, 1024)
    padded_n = _round_up(n_rows, row_multiple)
    rows = min(rows, padded_n)
    if rows >= padded_n and padded_n > row_multiple:
        rows = max(row_multiple, _round_up((padded_n + 1) // 2, row_multiple))
    return int(rows)


def topk_smoothing_loss(logits, labels, k=5, label_smoothing=0.1,
                        reduction="mean", tile_m=None, use_mxu_sums=None,
                        block_budget_bytes=None, vmem_limit_bytes=None):
    """Forward pass of TopKSmoothingLoss.

    logits: (..., V) float; labels: (...,) integer class indices.
    Returns a scalar for reduction in {'mean','sum'}, per-row losses for 'none'.
    """
    vocab = logits.shape[-1]
    assert vocab >= k, "top-k requires V >= k"
    logits2d = logits.reshape(-1, vocab)
    labels1d = labels.reshape(-1).astype(jnp.int32)
    n_rows = logits2d.shape[0]

    itemsize = jnp.dtype(logits2d.dtype).itemsize
    # Sub-32-bit dtypes pack rows along sublanes: f32 -> 8, bf16 -> 16, i8 -> 32.
    row_multiple = {4: 8, 2: 16, 1: 32}.get(itemsize, 8)

    block_budget_bytes, vmem_limit_bytes = _vmem_budgets(block_budget_bytes,
                                                         vmem_limit_bytes)
    if tile_m is None:
        tile_m = _choose_tile_m(n_rows, vocab, row_multiple, block_budget_bytes)
    assert tile_m % row_multiple == 0

    if use_mxu_sums is None:
        # Keep the (V, 128) f32 ones operand a small VMEM constant; for very
        # large vocabularies fall back to VPU/XLU lane sums.
        use_mxu_sums = vocab * 128 * 4 <= 4 * 1024 * 1024

    n_pad = _round_up(n_rows, tile_m)
    if n_pad != n_rows:
        logits2d = jnp.pad(logits2d, ((0, n_pad - n_rows), (0, 0)))
        labels1d = jnp.pad(labels1d, (0, n_pad - n_rows))
    labels2d = labels1d.reshape(n_pad, 1)

    uw = float(label_smoothing)
    hw = 1.0 - uw
    kernel = _make_topk_smoothing_kernel(k, uw, hw, use_mxu_sums)

    grid = (n_pad // tile_m,)
    cost = pl.CostEstimate(
        flops=int(n_pad * vocab * (3 * k + 8)),
        transcendentals=int(n_pad * vocab + n_pad),
        bytes_accessed=int(n_pad * vocab * itemsize + 2 * n_pad * 4),
    )

    per_row = pl.pallas_call(
        kernel,
        out_shape=jax.ShapeDtypeStruct((n_pad, 1), jnp.float32),
        grid_spec=pltpu.PrefetchScalarGridSpec(
            num_scalar_prefetch=0,
            grid=grid,
            in_specs=[
                pl.BlockSpec((tile_m, vocab), lambda i: (i, 0)),   # logits rows
                pl.BlockSpec((tile_m, 1), lambda i: (i, 0)),       # labels
            ],
            out_specs=pl.BlockSpec((tile_m, 1), lambda i: (i, 0)),
        ),
        compiler_params=pltpu.CompilerParams(
            dimension_semantics=("parallel",),
            vmem_limit_bytes=int(vmem_limit_bytes),
        ),
        cost_estimate=cost,
    )(logits2d, labels2d)

    per_row = per_row[:n_rows, 0]
    if reduction == "mean":
        return jnp.mean(per_row)
    if reduction == "sum":
        return jnp.sum(per_row)
    return per_row.reshape(labels.shape)


def _reference_loss(logits, labels, k, label_smoothing):
    """Pure-JAX mirror of the PyTorch module (computed in f32)."""
    V = logits.shape[-1]
    x = logits.reshape(-1, V).astype(jnp.float32)
    y = labels.reshape(-1)
    logp = jax.nn.log_softmax(x, axis=-1)
    _, idx = jax.lax.top_k(x, k)
    rows = jnp.arange(x.shape[0])[:, None]
    tgt = jnp.zeros_like(x).at[rows, idx].set(1.0 / k)
    uniform = jnp.mean(-jnp.sum(tgt * logp, axis=-1))
    hard = jnp.mean(-jnp.take_along_axis(logp, y[:, None], axis=-1)[:, 0])
    return label_smoothing * uniform + (1.0 - label_smoothing) * hard


if __name__ == "__main__":
    K = 5
    LS = 0.1
    key = jax.random.PRNGKey(0)
    k_a, k_b, k_c, k_d = jax.random.split(key, 4)

    cases = []
    # 1) f32, batch=2, seq=8, vocab=256.
    B, S, V = 2, 8, 256
    logits_f32 = jax.random.normal(k_a, (B, S, V), dtype=jnp.float32)
    labels_f32 = jax.random.randint(k_b, (B, S), 0, V, dtype=jnp.int32)
    cases.append((logits_f32, labels_f32, 1e-4))
    # 2) f32 with heavy ties (exercises the duplicate-aware peel) and a ragged
    #    row count (exercises row padding / multi-tile grid).
    B2, S2 = 3, 5
    logits_tied = jnp.round(
        jax.random.normal(k_c, (B2, S2, V), dtype=jnp.float32) * 2.0)
    labels_tied = jax.random.randint(k_d, (B2, S2), 0, V, dtype=jnp.int32)
    cases.append((logits_tied, labels_tied, 1e-4))
    # 3) bf16 logits: peel/compare/select run natively in bf16, LSE path in f32.
    cases.append((logits_f32.astype(jnp.bfloat16), labels_f32, 2e-3))

    for lg, lb, atol in cases:
        loss = topk_smoothing_loss(lg, lb, k=K, label_smoothing=LS,
                                   reduction="mean")
        jax.block_until_ready(loss)
        ref = _reference_loss(lg, lb, K, LS)
        assert jnp.allclose(loss, ref, atol=atol, rtol=1e-4), (loss, ref)

    print("KERNEL_OK")
</pallas_src>

<mosaic_0001>
module attributes {stable_mosaic.version = 11 : i64} {
  func.func @kernel(%arg0: i32, %arg1: memref<8x256xf32, #tpu.memory_space<vmem>>, %arg2: memref<8x1xi32, #tpu.memory_space<vmem>>, %arg3: memref<8x1xf32, #tpu.memory_space<vmem>>) attributes {dimension_semantics = [#tpu.dimension_semantics<parallel>], iteration_bounds = array<i64: 2>, scalar_prefetch = 0 : i64, scratch_operands = 0 : i64, tpu.core_type = #tpu.core_type<tc>, window_params = [{transform_indices = @transform_0, window_bounds = array<i64: 8, 256>}, {transform_indices = @transform_1, window_bounds = array<i64: 8, 1>}, {transform_indices = @transform_2, window_bounds = array<i64: 8, 1>}]} {
    %c0 = arith.constant 0 : index
    %c0_0 = arith.constant 0 : index
    %0 = vector.load %arg1[%c0, %c0_0] : memref<8x256xf32, #tpu.memory_space<vmem>>, vector<8x256xf32>
    %cst = arith.constant 1.000000e+00 : f32
    %1 = vector.broadcast %cst : f32 to vector<256x128xf32>
    %cst_1 = arith.constant dense<0xFF800000> : vector<8xf32>
    %2 = vector.multi_reduction <maximumf>, %0, %cst_1 [1] : vector<8x256xf32> to vector<8xf32>
    %3 = vector.shape_cast %2 : vector<8xf32> to vector<8x1xf32>
    %4 = vector.broadcast %3 : vector<8x1xf32> to vector<8x256xf32>
    %5 = arith.subf %0, %4 : vector<8x256xf32>
    %6 = math.exp %5 : vector<8x256xf32>
    %cst_2 = arith.constant dense<0.000000e+00> : vector<8x128xf32>
    %7 = tpu.matmul %6, %1, %cst_2 {dimension_numbers = #tpu.dot_dimension_numbers<[1], [0], [0], [1], [0, 0, 1, 1], [], []>} : vector<8x256xf32>, vector<256x128xf32>, vector<8x128xf32> -> vector<8x128xf32>
    %8 = vector.extract_strided_slice %7 {offsets = [0, 0], sizes = [8, 1], strides = [1, 1]} : vector<8x128xf32> to vector<8x1xf32>
    %9 = math.log %8 : vector<8x1xf32>
    %10 = arith.addf %3, %9 : vector<8x1xf32>
    %cst_3 = arith.constant 5.000000e+00 : f32
    %11 = vector.broadcast %cst_3 : f32 to vector<8x1xf32>
    %12 = vector.broadcast %3 : vector<8x1xf32> to vector<8x256xf32>
    %13 = arith.cmpf oeq, %0, %12 : vector<8x256xf32>
    %14 = arith.extui %13 : vector<8x256xi1> to vector<8x256xi32>
    %15 = arith.sitofp %14 : vector<8x256xi32> to vector<8x256xf32>
    %cst_4 = arith.constant dense<0.000000e+00> : vector<8x128xf32>
    %16 = tpu.matmul %15, %1, %cst_4 {dimension_numbers = #tpu.dot_dimension_numbers<[1], [0], [0], [1], [0, 0, 1, 1], [], []>} : vector<8x256xf32>, vector<256x128xf32>, vector<8x128xf32> -> vector<8x128xf32>
    %17 = vector.extract_strided_slice %16 {offsets = [0, 0], sizes = [8, 1], strides = [1, 1]} : vector<8x128xf32> to vector<8x1xf32>
    %18 = arith.minimumf %17, %11 : vector<8x1xf32>
    %19 = arith.mulf %18, %3 : vector<8x1xf32>
    %20 = arith.subf %11, %18 : vector<8x1xf32>
    %cst_5 = arith.constant 0xFF800000 : f32
    %21 = vector.broadcast %cst_5 : f32 to vector<8x256xf32>
    %22 = arith.select %13, %21, %0 : vector<8x256xi1>, vector<8x256xf32>
    %cst_6 = arith.constant dense<0xFF800000> : vector<8xf32>
    %23 = vector.multi_reduction <maximumf>, %22, %cst_6 [1] : vector<8x256xf32> to vector<8xf32>
    %24 = vector.shape_cast %23 : vector<8xf32> to vector<8x1xf32>
    %25 = vector.broadcast %24 : vector<8x1xf32> to vector<8x256xf32>
    %26 = arith.cmpf oeq, %22, %25 : vector<8x256xf32>
    %27 = arith.extui %26 : vector<8x256xi1> to vector<8x256xi32>
    %28 = arith.sitofp %27 : vector<8x256xi32> to vector<8x256xf32>
    %cst_7 = arith.constant dense<0.000000e+00> : vector<8x128xf32>
    %29 = tpu.matmul %28, %1, %cst_7 {dimension_numbers = #tpu.dot_dimension_numbers<[1], [0], [0], [1], [0, 0, 1, 1], [], []>} : vector<8x256xf32>, vector<256x128xf32>, vector<8x128xf32> -> vector<8x128xf32>
    %30 = vector.extract_strided_slice %29 {offsets = [0, 0], sizes = [8, 1], strides = [1, 1]} : vector<8x128xf32> to vector<8x1xf32>
    %31 = arith.minimumf %30, %20 : vector<8x1xf32>
    %cst_8 = arith.constant 0.000000e+00 : f32
    %32 = vector.broadcast %cst_8 : f32 to vector<8x1xf32>
    %33 = arith.cmpf ogt, %31, %32 : vector<8x1xf32>
    %34 = arith.mulf %31, %24 : vector<8x1xf32>
    %cst_9 = arith.constant 0.000000e+00 : f32
    %35 = vector.broadcast %cst_9 : f32 to vector<8x1xf32>
    %36 = arith.select %33, %34, %35 : vector<8x1xi1>, vector<8x1xf32>
    %37 = arith.addf %19, %36 : vector<8x1xf32>
    %38 = arith.subf %20, %31 : vector<8x1xf32>
    %cst_10 = arith.constant 0xFF800000 : f32
    %39 = vector.broadcast %cst_10 : f32 to vector<8x256xf32>
    %40 = arith.select %26, %39, %22 : vector<8x256xi1>, vector<8x256xf32>
    %cst_11 = arith.constant dense<0xFF800000> : vector<8xf32>
    %41 = vector.multi_reduction <maximumf>, %40, %cst_11 [1] : vector<8x256xf32> to vector<8xf32>
    %42 = vector.shape_cast %41 : vector<8xf32> to vector<8x1xf32>
    %43 = vector.broadcast %42 : vector<8x1xf32> to vector<8x256xf32>
    %44 = arith.cmpf oeq, %40, %43 : vector<8x256xf32>
    %45 = arith.extui %44 : vector<8x256xi1> to vector<8x256xi32>
    %46 = arith.sitofp %45 : vector<8x256xi32> to vector<8x256xf32>
    %cst_12 = arith.constant dense<0.000000e+00> : vector<8x128xf32>
    %47 = tpu.matmul %46, %1, %cst_12 {dimension_numbers = #tpu.dot_dimension_numbers<[1], [0], [0], [1], [0, 0, 1, 1], [], []>} : vector<8x256xf32>, vector<256x128xf32>, vector<8x128xf32> -> vector<8x128xf32>
    %48 = vector.extract_strided_slice %47 {offsets = [0, 0], sizes = [8, 1], strides = [1, 1]} : vector<8x128xf32> to vector<8x1xf32>
    %49 = arith.minimumf %48, %38 : vector<8x1xf32>
    %cst_13 = arith.constant 0.000000e+00 : f32
    %50 = vector.broadcast %cst_13 : f32 to vector<8x1xf32>
    %51 = arith.cmpf ogt, %49, %50 : vector<8x1xf32>
    %52 = arith.mulf %49, %42 : vector<8x1xf32>
    %cst_14 = arith.constant 0.000000e+00 : f32
    %53 = vector.broadcast %cst_14 : f32 to vector<8x1xf32>
    %54 = arith.select %51, %52, %53 : vector<8x1xi1>, vector<8x1xf32>
    %55 = arith.addf %37, %54 : vector<8x1xf32>
    %56 = arith.subf %38, %49 : vector<8x1xf32>
    %cst_15 = arith.constant 0xFF800000 : f32
    %57 = vector.broadcast %cst_15 : f32 to vector<8x256xf32>
    %58 = arith.select %44, %57, %40 : vector<8x256xi1>, vector<8x256xf32>
    %cst_16 = arith.constant dense<0xFF800000> : vector<8xf32>
    %59 = vector.multi_reduction <maximumf>, %58, %cst_16 [1] : vector<8x256xf32> to vector<8xf32>
    %60 = vector.shape_cast %59 : vector<8xf32> to vector<8x1xf32>
    %61 = vector.broadcast %60 : vector<8x1xf32> to vector<8x256xf32>
    %62 = arith.cmpf oeq, %58, %61 : vector<8x256xf32>
    %63 = arith.extui %62 : vector<8x256xi1> to vector<8x256xi32>
    %64 = arith.sitofp %63 : vector<8x256xi32> to vector<8x256xf32>
    %cst_17 = arith.constant dense<0.000000e+00> : vector<8x128xf32>
    %65 = tpu.matmul %64, %1, %cst_17 {dimension_numbers = #tpu.dot_dimension_numbers<[1], [0], [0], [1], [0, 0, 1, 1], [], []>} : vector<8x256xf32>, vector<256x128xf32>, vector<8x128xf32> -> vector<8x128xf32>
    %66 = vector.extract_strided_slice %65 {offsets = [0, 0], sizes = [8, 1], strides = [1, 1]} : vector<8x128xf32> to vector<8x1xf32>
    %67 = arith.minimumf %66, %56 : vector<8x1xf32>
    %cst_18 = arith.constant 0.000000e+00 : f32
    %68 = vector.broadcast %cst_18 : f32 to vector<8x1xf32>
    %69 = arith.cmpf ogt, %67, %68 : vector<8x1xf32>
    %70 = arith.mulf %67, %60 : vector<8x1xf32>
    %cst_19 = arith.constant 0.000000e+00 : f32
    %71 = vector.broadcast %cst_19 : f32 to vector<8x1xf32>
    %72 = arith.select %69, %70, %71 : vector<8x1xi1>, vector<8x1xf32>
    %73 = arith.addf %55, %72 : vector<8x1xf32>
    %74 = arith.subf %56, %67 : vector<8x1xf32>
    %cst_20 = arith.constant 0xFF800000 : f32
    %75 = vector.broadcast %cst_20 : f32 to vector<8x256xf32>
    %76 = arith.select %62, %75, %58 : vector<8x256xi1>, vector<8x256xf32>
    %cst_21 = arith.constant dense<0xFF800000> : vector<8xf32>
    %77 = vector.multi_reduction <maximumf>, %76, %cst_21 [1] : vector<8x256xf32> to vector<8xf32>
    %78 = vector.shape_cast %77 : vector<8xf32> to vector<8x1xf32>
    %79 = vector.broadcast %78 : vector<8x1xf32> to vector<8x256xf32>
    %80 = arith.cmpf oeq, %76, %79 : vector<8x256xf32>
    %81 = arith.extui %80 : vector<8x256xi1> to vector<8x256xi32>
    %82 = arith.sitofp %81 : vector<8x256xi32> to vector<8x256xf32>
    %cst_22 = arith.constant dense<0.000000e+00> : vector<8x128xf32>
    %83 = tpu.matmul %82, %1, %cst_22 {dimension_numbers = #tpu.dot_dimension_numbers<[1], [0], [0], [1], [0, 0, 1, 1], [], []>} : vector<8x256xf32>, vector<256x128xf32>, vector<8x128xf32> -> vector<8x128xf32>
    %84 = vector.extract_strided_slice %83 {offsets = [0, 0], sizes = [8, 1], strides = [1, 1]} : vector<8x128xf32> to vector<8x1xf32>
    %85 = arith.minimumf %84, %74 : vector<8x1xf32>
    %cst_23 = arith.constant 0.000000e+00 : f32
    %86 = vector.broadcast %cst_23 : f32 to vector<8x1xf32>
    %87 = arith.cmpf ogt, %85, %86 : vector<8x1xf32>
    %88 = arith.mulf %85, %78 : vector<8x1xf32>
    %cst_24 = arith.constant 0.000000e+00 : f32
    %89 = vector.broadcast %cst_24 : f32 to vector<8x1xf32>
    %90 = arith.select %87, %88, %89 : vector<8x1xi1>, vector<8x1xf32>
    %91 = arith.addf %73, %90 : vector<8x1xf32>
    %c0_25 = arith.constant 0 : index
    %c0_26 = arith.constant 0 : index
    %92 = vector.load %arg2[%c0_25, %c0_26] : memref<8x1xi32, #tpu.memory_space<vmem>>, vector<8x1xi32>
    %93 = tpu.iota {dimensions = array<i32: 1>} : vector<8x256xi32>
    %94 = vector.broadcast %92 : vector<8x1xi32> to vector<8x256xi32>
    %95 = arith.cmpi eq, %93, %94 : vector<8x256xi32>
    %cst_27 = arith.constant 0.000000e+00 : f32
    %96 = vector.broadcast %cst_27 : f32 to vector<8x256xf32>
    %97 = arith.select %95, %0, %96 : vector<8x256xi1>, vector<8x256xf32>
    %cst_28 = arith.constant dense<0.000000e+00> : vector<8x128xf32>
    %98 = tpu.matmul %97, %1, %cst_28 {dimension_numbers = #tpu.dot_dimension_numbers<[1], [0], [0], [1], [0, 0, 1, 1], [], []>} : vector<8x256xf32>, vector<256x128xf32>, vector<8x128xf32> -> vector<8x128xf32>
    %99 = vector.extract_strided_slice %98 {offsets = [0, 0], sizes = [8, 1], strides = [1, 1]} : vector<8x128xf32> to vector<8x1xf32>
    %cst_29 = arith.constant 2.000000e-02 : f32
    %100 = vector.broadcast %cst_29 : f32 to vector<8x1xf32>
    %101 = arith.mulf %100, %91 : vector<8x1xf32>
    %102 = arith.subf %10, %101 : vector<8x1xf32>
    %cst_30 = arith.constant 0.899999976 : f32
    %103 = vector.broadcast %cst_30 : f32 to vector<8x1xf32>
    %104 = arith.mulf %103, %99 : vector<8x1xf32>
    %105 = arith.subf %102, %104 : vector<8x1xf32>
    %c0_31 = arith.constant 0 : index
    %c0_32 = arith.constant 0 : index
    %106 = vector.load %arg3[%c0_31, %c0_32] : memref<8x1xf32, #tpu.memory_space<vmem>>, vector<8x1xf32>
    tpu.vector_store %arg3[%c0_31, %c0_32], %105 {strides = array<i32>} : memref<8x1xf32, #tpu.memory_space<vmem>>, vector<8x1xf32>,
    return
  }
  func.func @transform_0(%arg0: i32) -> (i32, i32) {
    %c0_i32 = arith.constant 0 : i32
    %c0_i32_0 = arith.constant 0 : i32
    return %arg0, %c0_i32 : i32, i32
  }
  func.func @transform_1(%arg0: i32) -> (i32, i32) {
    %c0_i32 = arith.constant 0 : i32
    %c0_i32_0 = arith.constant 0 : i32
    return %arg0, %c0_i32 : i32, i32
  }
  func.func @transform_2(%arg0: i32) -> (i32, i32) {
    %c0_i32 = arith.constant 0 : i32
    %c0_i32_0 = arith.constant 0 : i32
    return %arg0, %c0_i32 : i32, i32
  }
}

</mosaic_0001>

<llo_original>
// kernel: tpu_custom_call.1
$region0: #{tpu_custom_call.1}
  #allocation0 [shape = 'u32[]', space=smem, size = 0x4, offset = 0x4, fixed_abs, tag = 'smem constant byte address 0x4 - core index']
  #allocation1 [shape = 'u32[144,128]{1,0:T(1,128)}', space=vmem, size = 0x12000, scoped, tag = 'internal scratch']
  %s0 = inlined_call_operand.hbm [shape: f32[16,256], index: 0, kind: input, shape index: {}]
  %s1 = inlined_call_operand.vmem [shape: s32[16,1], index: 1, kind: input, shape index: {}]
  %s2 = inlined_call_operand.vmem [shape: f32[16,1], index: 2, kind: output, shape index: {}]
  %s3 = sld [smem:[#allocation0]]
  $region45: #{tpu_custom_call.1} parent=0
    _
  %s5 = ssub.s32 1, %s3
  %s6 = scalar_select 0, %s5, %s3
  $region1: #{tpu_custom_call.1} parent=0
    #allocation2 [shape = 'u8[16384]{0}', space=vmem, size = 0x4000, scoped, tag = 'input window, operand 0']
    #allocation3 [shape = 's32[2]{0}', space=sflag, size = 0x8, scoped, tag = 'scoped memory for tpu_custom_call.1']
    %7 = vsyncpa [#allocation3], 0
    %s8 = scalar_lea.sflag [#allocation3], 1
    %9 = vsyncpa %s8, 0
    loop: start=0, step=1, limit=4
    $region2: #{tpu_custom_call.1} parent=1 // loop_pre_header
      _
    $region3: #{tpu_custom_call.1} parent=1 // loop_header
      %s11 = sphi 0, %s15
      %p12 = scmp.ge.s32.totalorder %s11, 4
      %s21 = sphi 0, %s23
      %s24 = sphi 0, %s21
      %s25 = sphi 0, %s24
      %s41 = sphi 0, %s25
      %s47 = sphi 0, %s49
      %s50 = sphi 0, %s47
      %s51 = sphi 0, %s50
      %s67 = sphi 0, %s51
      %s73 = sphi 0, %s75
      %s76 = sphi 0, %s73
      %s77 = sphi 0, %s76
      %s93 = sphi 0, %s77
    $region4: #{tpu_custom_call.1} parent=1 // loop_header_branch
      %14 = sbr.rel (%p12) target = $region8
    $region5: #{tpu_custom_call.1} parent=1 // loop_body
      %s16 = ssub.s32 %s11, 1
      %s17 = ssub.s32 %s11, 2
      %s18 = sadd.s32 %s11, 1
      %s19 = ssub.s32 %s11, %s18
      %p20 = scmp.eq.s32.totalorder %s19, 0
      %s22 = sadd.s32 %s21, 1
      %s23 = scalar_select %p20, %s21, %s22
      %p26 = pneg %p20
      %p27 = scmp.eq.s32.totalorder %s11, 1
      %p28 = por %p26, %p27
      %p29 = scmp.ne.s32.totalorder %s21, %s24
      %p30 = scmp.eq.s32.totalorder %s11, 0
      %p31 = por %p29, %p30
      %p32 = scmp.ne.s32.totalorder %s21, %s24
      %p33 = scmp.eq.s32.totalorder %s16, 1
      %p34 = por %p32, %p33
      %p35 = scmp.ne.s32.totalorder %s24, %s25
      %p36 = scmp.eq.s32.totalorder %s16, 0
      %p37 = por %p35, %p36
      %p38 = scmp.ne.s32.totalorder %s24, %s25
      %p39 = scmp.eq.s32.totalorder %s17, 1
      %p40 = por %p38, %p39
      %p42 = scmp.ne.s32.totalorder %s25, %s41
      %p43 = scmp.eq.s32.totalorder %s17, 0
      %p44 = por %p42, %p43
      %s45 = ssub.s32 %s11, %s18
      %p46 = scmp.eq.s32.totalorder %s45, 0
      %s48 = sadd.s32 %s47, 1
      %s49 = scalar_select %p46, %s47, %s48
      %p52 = pneg %p46
      %p53 = scmp.eq.s32.totalorder %s11, 1
      %p54 = por %p52, %p53
      %p55 = scmp.ne.s32.totalorder %s47, %s50
      %p56 = scmp.eq.s32.totalorder %s11, 0
      %p57 = por %p55, %p56
      %p58 = scmp.ne.s32.totalorder %s47, %s50
      %p59 = scmp.eq.s32.totalorder %s16, 1
      %p60 = por %p58, %p59
      %p61 = scmp.ne.s32.totalorder %s50, %s51
      %p62 = scmp.eq.s32.totalorder %s16, 0
      %p63 = por %p61, %p62
      %p64 = scmp.ne.s32.totalorder %s50, %s51
      %p65 = scmp.eq.s32.totalorder %s17, 1
      %p66 = por %p64, %p65
      %p68 = scmp.ne.s32.totalorder %s51, %s67
      %p69 = scmp.eq.s32.totalorder %s17, 0
      %p70 = por %p68, %p69
      %s71 = ssub.s32 %s11, %s18
      %p72 = scmp.eq.s32.totalorder %s71, 0
      %s74 = sadd.s32 %s73, 1
      %s75 = scalar_select %p72, %s73, %s74
      %p78 = pneg %p72
      %p79 = scmp.eq.s32.totalorder %s11, 1
      %p80 = por %p78, %p79
      %p81 = scmp.ne.s32.totalorder %s73, %s76
      %p82 = scmp.eq.s32.totalorder %s11, 0
      %p83 = por %p81, %p82
      %p84 = scmp.ne.s32.totalorder %s73, %s76
      %p85 = scmp.eq.s32.totalorder %s16, 1
      %p86 = por %p84, %p85
      %p87 = scmp.ne.s32.totalorder %s76, %s77
      %p88 = scmp.eq.s32.totalorder %s16, 0
      %p89 = por %p87, %p88
      %p90 = scmp.ne.s32.totalorder %s76, %s77
      %p91 = scmp.eq.s32.totalorder %s17, 1
      %p92 = por %p90, %p91
      %p94 = scmp.ne.s32.totalorder %s77, %s93
      %p95 = scmp.eq.s32.totalorder %s17, 0
      %p96 = por %p94, %p95
      %p97 = scmp.le.s32.totalorder 1, %s11
      %p98 = scmp.lt.s32.totalorder %s11, 3
      %p99 = pnand %p97, %p98
      %p100 = pneg %p99
      // Predicated region
      $region9: #{tpu_custom_call.1} parent=5 // pred_check
        _
      $region10: #{tpu_custom_call.1} parent=5 // pred_check_branch
        %102 = sbr.rel (%p99) target = $region12
      $region11: #{tpu_custom_call.1} parent=5 // pred_region
        %s103 = ssub.s32 %s11, 1
      $region12: #{tpu_custom_call.1} parent=5 // pred_fallthru
        _
      %p104 = scmp.lt.s32.totalorder %s11, 2
      // Predicated region
      $region13: #{tpu_custom_call.1} parent=5 // pred_check
        %p105 = pneg %p104
      $region14: #{tpu_custom_call.1} parent=5 // pred_check_branch
        %107 = sbr.rel (%p105) target = $region16
      $region15: #{tpu_custom_call.1} parent=5 // pred_region
        // Predicated region
        $region17: #{tpu_custom_call.1} parent=15 // pred_check
          %p108 = pneg %p31
        $region18: #{tpu_custom_call.1} parent=15 // pred_check_branch
          %110 = sbr.rel (%p108) target = $region20
        $region19: #{tpu_custom_call.1} parent=15 // pred_region
          %s111 = sand.u32 %s21, 1
          %s112 = scalar_lea.sflag [#allocation3], %s111
          %s113 = sand.u32 %s21, 1
          %s114 = smul.addr %s113, 16
          %s115 = scalar_lea.vmem [#allocation2], %s114
          %s117 = ssub.s32 256, 256
          %118 = vsyncadd %s112, %s117
          %s119 = smul.addr %s11, 2
          %s120 = smul.addr %s119, 128
          %s121 = scalar_lea.hbm %s0, %s120
          %s123 = sshll.u32 %s115, 4
          %s124 = int_to_ptr.vmem [resolvable:$true] %s123
          %126 = dma.hbm_to_vmem [thread:$0]  %s121, 256, %s124, %s112
        $region20: #{tpu_custom_call.1} parent=15 // pred_fallthru
          _
        // Predicated region
        $region21: #{tpu_custom_call.1} parent=15 // pred_check
          %p127 = pneg %p57
        $region22: #{tpu_custom_call.1} parent=15 // pred_check_branch
          %129 = sbr.rel (%p127) target = $region24
        $region23: #{tpu_custom_call.1} parent=15 // pred_region
          %p130 = scmp.lt.s32.totalorder %s11, 1
          %s131 = scalar_select %p130, %s11, 1
          %s132 = smul.addr %s131, 8
          %s133 = scalar_lea.vmem %s1, %s132
        $region24: #{tpu_custom_call.1} parent=15 // pred_fallthru
          _
      $region16: #{tpu_custom_call.1} parent=5 // pred_fallthru
        _
      %p134 = scmp.le.s32.totalorder 1, %s11
      %p135 = scmp.lt.s32.totalorder %s11, 3
      %p136 = pnand %p134, %p135
      %p137 = pneg %p136
      // Predicated region
      $region25: #{tpu_custom_call.1} parent=5 // pred_check
        _
      $region26: #{tpu_custom_call.1} parent=5 // pred_check_branch
        %139 = sbr.rel (%p136) target = $region28
      $region27: #{tpu_custom_call.1} parent=5 // pred_region
        %s140 = ssub.s32 %s11, 1
        %s141 = sand.u32 %s24, 1
        %s142 = scalar_lea.sflag [#allocation3], %s141
        %s143 = sand.u32 %s24, 1
        %s144 = smul.addr %s143, 16
        %s145 = scalar_lea.vmem [#allocation2], %s144
        // Predicated region
        $region29: #{tpu_custom_call.1} parent=27 // pred_check
          %p146 = pneg %p37
        $region30: #{tpu_custom_call.1} parent=27 // pred_check_branch
          %148 = sbr.rel (%p146) target = $region32
        $region31: #{tpu_custom_call.1} parent=27 // pred_region
          %149 = dma.done %s142, 256
        $region32: #{tpu_custom_call.1} parent=27 // pred_fallthru
          _
        %s150 = sand.u32 %s24, 1
        %s151 = scalar_lea.sflag [#allocation3], %s150
        %s152 = sand.u32 %s24, 1
        %s153 = smul.addr %s152, 16
        %s154 = scalar_lea.vmem [#allocation2], %s153
        %p155 = pneg %p37
        %p156 = pneg %p34
        %p157 = scmp.lt.s32.totalorder %s16, 1
        %s158 = scalar_select %p157, %s16, 1
        %s159 = smul.addr %s158, 8
        %s160 = scalar_lea.vmem %s1, %s159
        %p161 = pneg %p63
        %p162 = pneg %p60
        %p163 = pneg %p89
        %p164 = pneg %p86
        %p165 = scmp.lt.s32.totalorder %s16, 1
        %s166 = scalar_select %p165, %s16, 1
        %s167 = smul.addr %s166, 8
        %s168 = scalar_lea.vmem %s2, %s167
        %p169 = scmp.lt.s32.totalorder %s16, 1
        %s170 = scalar_select %p169, %s16, 1
        %s171 = smul.addr %s170, 8
        %s172 = scalar_lea.vmem %s1, %s171
        %p173 = scmp.lt.s32.totalorder %s16, 1
        %s174 = scalar_select %p173, %s16, 1
        %s175 = smul.addr %s174, 8
        %s176 = scalar_lea.vmem %s2, %s175
        %v177 = vld [vmem:[%s145] sm:$0xff]
        %v178 = vld [vmem:[%s145 + $0x8] sm:$0xff]
        %v179 = vmax.f32 %v177, %v178
        %180 = vmax.xlane.f32.xlu0 %v179
        %v181 = vpop.xlane.xlu0 %180
        %v182 = vsub.f32 %v177, %v181
        %v183 = vsub.f32 %v178, %v181
        %v184 = vmul.f32 %v182, 1.442695
        %v185 = vpow.pop %v184
        %v186 = vmul.f32 %v183, 1.442695
        %v187 = vpow.pop %v186
        %188 = vmatprep.subr.mxu0 0.0
        %189 = vmatpush1.msra.mxu0 1.0
        %190 = vmatprep.subr.mxu0 0.0
        %191 = vmatpush1.msra.mxu0 1.0
        %192 = vmatprep.subr.mxu0 0.0
        %193 = vmatpush1.msra.mxu0 1.0
        %194 = vmatprep.subr.mxu0 0.0
        %195 = vmatpush1.msra.mxu0 1.0
        %196 = vmatprep.subr.mxu0 0.0
        %197 = vmatpush1.msra.mxu0 1.0
        %198 = vmatprep.subr.mxu0 0.0
        %199 = vmatpush1.msra.mxu0 1.0
        %200 = vmatprep.subr.mxu0 0.0
        %201 = vmatpush1.msra.mxu0 1.0
        %202 = vmatprep.subr.mxu0 0.0
        %203 = vmatpush1.msra.mxu0 1.0
        %204 = vmatprep.subr.mxu0 0.0
        %205 = vmatpush1.msra.mxu0 1.0
        %206 = vmatprep.subr.mxu0 0.0
        %207 = vmatpush1.msra.mxu0 1.0
        %208 = vmatprep.subr.mxu0 0.0
        %209 = vmatpush1.msra.mxu0 1.0
        %210 = vmatprep.subr.mxu0 0.0
        %211 = vmatpush1.msra.mxu0 1.0
        %212 = vmatprep.subr.mxu0 0.0
        %213 = vmatpush1.msra.mxu0 1.0
        %214 = vmatprep.subr.mxu0 0.0
        %215 = vmatpush1.msra.mxu0 1.0
        %216 = vmatprep.subr.mxu0 0.0
        %217 = vmatpush1.msra.mxu0 1.0
        %218 = vmatprep.subr.mxu0 0.0
        %219 = vmatpush1.msra.mxu0 1.0
        %220 = vmatprep.subr.mxu0 0.0
        %221 = vmatpush1.msra.mxu0 1.0
        %222 = vmatprep.subr.mxu0 0.0
        %223 = vmatpush1.msra.mxu0 1.0
        %224 = vmatprep.subr.mxu0 0.0
        %225 = vmatpush1.msra.mxu0 1.0
        %226 = vmatprep.subr.mxu0 0.0
        %227 = vmatpush1.msra.mxu0 1.0
        %228 = vmatprep.subr.mxu0 0.0
        %229 = vmatpush1.msra.mxu0 1.0
        %230 = vmatprep.subr.mxu0 0.0
        %231 = vmatpush1.msra.mxu0 1.0
        %232 = vmatprep.subr.mxu0 0.0
        %233 = vmatpush1.msra.mxu0 1.0
        %234 = vmatprep.subr.mxu0 0.0
        %235 = vmatpush1.msra.mxu0 1.0
        %236 = vmatprep.subr.mxu0 0.0
        %237 = vmatpush1.msra.mxu0 1.0
        %238 = vmatprep.subr.mxu0 0.0
        %239 = vmatpush1.msra.mxu0 1.0
        %240 = vmatprep.subr.mxu0 0.0
        %241 = vmatpush1.msra.mxu0 1.0
        %242 = vmatprep.subr.mxu0 0.0
        %243 = vmatpush1.msra.mxu0 1.0
        %244 = vmatprep.subr.mxu0 0.0
        %245 = vmatpush1.msra.mxu0 1.0
        %246 = vmatprep.subr.mxu0 0.0
        %247 = vmatpush1.msra.mxu0 1.0
        %248 = vmatprep.subr.mxu0 0.0
        %249 = vmatpush1.msra.mxu0 1.0
        %250 = vmatprep.subr.mxu0 0.0
        %251 = vmatpush1.msra.mxu0 1.0
        %252 = vmatprep.mubr.f32.mxu0 %v187
        %253 = vmatmul.mubr.f32.gmra.mrb[0].mxu0 %v185
        %v254 = vpop.f32.mrb[0].mxu0
        %v255 = vadd.f32 0.0, %v254
        %v256 = vpop.f32.mrb[0].mxu0
        %257 = vdwg.mxu0
        %v258 = vlog2.pop %v255
        %v259 = vmul.f32 %v258, 0.6931472
        %v260 = vadd.f32 %v181, %v259
        %vm261 = vcmp.eq.f32.partialorder %v177, %v181
        %vm262 = vcmp.eq.f32.partialorder %v178, %v181
        %v263 = vsel %vm261, 1, 0
        %v264 = vsel %vm262, 1, 0
        %v265 = vcvt.s32.f32 %v263
        %v266 = vcvt.s32.f32 %v264
        %267 = vmatprep.subr.mxu0 0.0
        %268 = vmatpush1.msra.mxu0 1.0
        %269 = vmatprep.subr.mxu0 0.0
        %270 = vmatpush1.msra.mxu0 1.0
        %271 = vmatprep.subr.mxu0 0.0
        %272 = vmatpush1.msra.mxu0 1.0
        %273 = vmatprep.subr.mxu0 0.0
        %274 = vmatpush1.msra.mxu0 1.0
        %275 = vmatprep.subr.mxu0 0.0
        %276 = vmatpush1.msra.mxu0 1.0
        %277 = vmatprep.subr.mxu0 0.0
        %278 = vmatpush1.msra.mxu0 1.0
        %279 = vmatprep.subr.mxu0 0.0
        %280 = vmatpush1.msra.mxu0 1.0
        %281 = vmatprep.subr.mxu0 0.0
        %282 = vmatpush1.msra.mxu0 1.0
        %283 = vmatprep.subr.mxu0 0.0
        %284 = vmatpush1.msra.mxu0 1.0
        %285 = vmatprep.subr.mxu0 0.0
        %286 = vmatpush1.msra.mxu0 1.0
        %287 = vmatprep.subr.mxu0 0.0
        %288 = vmatpush1.msra.mxu0 1.0
        %289 = vmatprep.subr.mxu0 0.0
        %290 = vmatpush1.msra.mxu0 1.0
        %291 = vmatprep.subr.mxu0 0.0
        %292 = vmatpush1.msra.mxu0 1.0
        %293 = vmatprep.subr.mxu0 0.0
        %294 = vmatpush1.msra.mxu0 1.0
        %295 = vmatprep.subr.mxu0 0.0
        %296 = vmatpush1.msra.mxu0 1.0
        %297 = vmatprep.subr.mxu0 0.0
        %298 = vmatpush1.msra.mxu0 1.0
        %299 = vmatprep.subr.mxu0 0.0
        %300 = vmatpush1.msra.mxu0 1.0
        %301 = vmatprep.subr.mxu0 0.0
        %302 = vmatpush1.msra.mxu0 1.0
        %303 = vmatprep.subr.mxu0 0.0
        %304 = vmatpush1.msra.mxu0 1.0
        %305 = vmatprep.subr.mxu0 0.0
        %306 = vmatpush1.msra.mxu0 1.0
        %307 = vmatprep.subr.mxu0 0.0
        %308 = vmatpush1.msra.mxu0 1.0
        %309 = vmatprep.subr.mxu0 0.0
        %310 = vmatpush1.msra.mxu0 1.0
        %311 = vmatprep.subr.mxu0 0.0
        %312 = vmatpush1.msra.mxu0 1.0
        %313 = vmatprep.subr.mxu0 0.0
        %314 = vmatpush1.msra.mxu0 1.0
        %315 = vmatprep.subr.mxu0 0.0
        %316 = vmatpush1.msra.mxu0 1.0
        %317 = vmatprep.subr.mxu0 0.0
        %318 = vmatpush1.msra.mxu0 1.0
        %319 = vmatprep.subr.mxu0 0.0
        %320 = vmatpush1.msra.mxu0 1.0
        %321 = vmatprep.subr.mxu0 0.0
        %322 = vmatpush1.msra.mxu0 1.0
        %323 = vmatprep.subr.mxu0 0.0
        %324 = vmatpush1.msra.mxu0 1.0
        %325 = vmatprep.subr.mxu0 0.0
        %326 = vmatpush1.msra.mxu0 1.0
        %327 = vmatprep.subr.mxu0 0.0
        %328 = vmatpush1.msra.mxu0 1.0
        %329 = vmatprep.subr.mxu0 0.0
        %330 = vmatpush1.msra.mxu0 1.0
        %331 = vmatprep.mubr.f32.mxu0 %v266
        %332 = vmatmul.mubr.f32.gmra.mrb[0].mxu0 %v265
        %v333 = vpop.f32.mrb[0].mxu0
        %v334 = vadd.f32 0.0, %v333
        %v335 = vpop.f32.mrb[0].mxu0
        %336 = vdwg.mxu0
        %v337 = vmin.f32 %v334, 5.0
        %v338 = vmul.f32 %v337, %v181
        %v339 = vsub.f32 5.0, %v337
        %v340 = vsel %vm261, -inf, %v177
        %v341 = vsel %vm262, -inf, %v178
        %v342 = vmax.f32 %v340, %v341
        %343 = vmax.xlane.f32.xlu0 %v342
        %v344 = vpop.xlane.xlu0 %343
        %vm345 = vcmp.eq.f32.partialorder %v340, %v344
        %vm346 = vcmp.eq.f32.partialorder %v341, %v344
        %v347 = vsel %vm345, 1, 0
        %v348 = vsel %vm346, 1, 0
        %v349 = vcvt.s32.f32 %v347
        %v350 = vcvt.s32.f32 %v348
        %351 = vmatprep.subr.mxu0 0.0
        %352 = vmatpush1.msra.mxu0 1.0
        %353 = vmatprep.subr.mxu0 0.0
        %354 = vmatpush1.msra.mxu0 1.0
        %355 = vmatprep.subr.mxu0 0.0
        %356 = vmatpush1.msra.mxu0 1.0
        %357 = vmatprep.subr.mxu0 0.0
        %358 = vmatpush1.msra.mxu0 1.0
        %359 = vmatprep.subr.mxu0 0.0
        %360 = vmatpush1.msra.mxu0 1.0
        %361 = vmatprep.subr.mxu0 0.0
        %362 = vmatpush1.msra.mxu0 1.0
        %363 = vmatprep.subr.mxu0 0.0
        %364 = vmatpush1.msra.mxu0 1.0
        %365 = vmatprep.subr.mxu0 0.0
        %366 = vmatpush1.msra.mxu0 1.0
        %367 = vmatprep.subr.mxu0 0.0
        %368 = vmatpush1.msra.mxu0 1.0
        %369 = vmatprep.subr.mxu0 0.0
        %370 = vmatpush1.msra.mxu0 1.0
        %371 = vmatprep.subr.mxu0 0.0
        %372 = vmatpush1.msra.mxu0 1.0
        %373 = vmatprep.subr.mxu0 0.0
        %374 = vmatpush1.msra.mxu0 1.0
        %375 = vmatprep.subr.mxu0 0.0
        %376 = vmatpush1.msra.mxu0 1.0
        %377 = vmatprep.subr.mxu0 0.0
        %378 = vmatpush1.msra.mxu0 1.0
        %379 = vmatprep.subr.mxu0 0.0
        %380 = vmatpush1.msra.mxu0 1.0
        %381 = vmatprep.subr.mxu0 0.0
        %382 = vmatpush1.msra.mxu0 1.0
        %383 = vmatprep.subr.mxu0 0.0
        %384 = vmatpush1.msra.mxu0 1.0
        %385 = vmatprep.subr.mxu0 0.0
        %386 = vmatpush1.msra.mxu0 1.0
        %387 = vmatprep.subr.mxu0 0.0
        %388 = vmatpush1.msra.mxu0 1.0
        %389 = vmatprep.subr.mxu0 0.0
        %390 = vmatpush1.msra.mxu0 1.0
        %391 = vmatprep.subr.mxu0 0.0
        %392 = vmatpush1.msra.mxu0 1.0
        %393 = vmatprep.subr.mxu0 0.0
        %394 = vmatpush1.msra.mxu0 1.0
        %395 = vmatprep.subr.mxu0 0.0
        %396 = vmatpush1.msra.mxu0 1.0
        %397 = vmatprep.subr.mxu0 0.0
        %398 = vmatpush1.msra.mxu0 1.0
        %399 = vmatprep.subr.mxu0 0.0
        %400 = vmatpush1.msra.mxu0 1.0
        %401 = vmatprep.subr.mxu0 0.0
        %402 = vmatpush1.msra.mxu0 1.0
        %403 = vmatprep.subr.mxu0 0.0
        %404 = vmatpush1.msra.mxu0 1.0
        %405 = vmatprep.subr.mxu0 0.0
        %406 = vmatpush1.msra.mxu0 1.0
        %407 = vmatprep.subr.mxu0 0.0
        %408 = vmatpush1.msra.mxu0 1.0
        %409 = vmatprep.subr.mxu0 0.0
        %410 = vmatpush1.msra.mxu0 1.0
        %411 = vmatprep.subr.mxu0 0.0
        %412 = vmatpush1.msra.mxu0 1.0
        %413 = vmatprep.subr.mxu0 0.0
        %414 = vmatpush1.msra.mxu0 1.0
        %415 = vmatprep.mubr.f32.mxu0 %v350
        %416 = vmatmul.mubr.f32.gmra.mrb[0].mxu0 %v349
        %v417 = vpop.f32.mrb[0].mxu0
        %v418 = vadd.f32 0.0, %v417
        %v419 = vpop.f32.mrb[0].mxu0
        %420 = vdwg.mxu0
        %v421 = vmin.f32 %v418, %v339
        %vm422 = vcmp.gt.f32.partialorder %v421, 0.0
        %v423 = vmul.f32 %v421, %v344
        %v424 = vsel %vm422, %v423, 0.0
        %v425 = vadd.f32 %v338, %v424
        %v426 = vsub.f32 %v339, %v421
        %v427 = vsel %vm345, -inf, %v340
        %v428 = vsel %vm346, -inf, %v341
        %v429 = vmax.f32 %v427, %v428
        %430 = vmax.xlane.f32.xlu0 %v429
        %v431 = vpop.xlane.xlu0 %430
        %vm432 = vcmp.eq.f32.partialorder %v427, %v431
        %vm433 = vcmp.eq.f32.partialorder %v428, %v431
        %v434 = vsel %vm432, 1, 0
        %v435 = vsel %vm433, 1, 0
        %v436 = vcvt.s32.f32 %v434
        %v437 = vcvt.s32.f32 %v435
        %438 = vmatprep.subr.mxu0 0.0
        %439 = vmatpush1.msra.mxu0 1.0
        %440 = vmatprep.subr.mxu0 0.0
        %441 = vmatpush1.msra.mxu0 1.0
        %442 = vmatprep.subr.mxu0 0.0
        %443 = vmatpush1.msra.mxu0 1.0
        %444 = vmatprep.subr.mxu0 0.0
        %445 = vmatpush1.msra.mxu0 1.0
        %446 = vmatprep.subr.mxu0 0.0
        %447 = vmatpush1.msra.mxu0 1.0
        %448 = vmatprep.subr.mxu0 0.0
        %449 = vmatpush1.msra.mxu0 1.0
        %450 = vmatprep.subr.mxu0 0.0
        %451 = vmatpush1.msra.mxu0 1.0
        %452 = vmatprep.subr.mxu0 0.0
        %453 = vmatpush1.msra.mxu0 1.0
        %454 = vmatprep.subr.mxu0 0.0
        %455 = vmatpush1.msra.mxu0 1.0
        %456 = vmatprep.subr.mxu0 0.0
        %457 = vmatpush1.msra.mxu0 1.0
        %458 = vmatprep.subr.mxu0 0.0
        %459 = vmatpush1.msra.mxu0 1.0
        %460 = vmatprep.subr.mxu0 0.0
        %461 = vmatpush1.msra.mxu0 1.0
        %462 = vmatprep.subr.mxu0 0.0
        %463 = vmatpush1.msra.mxu0 1.0
        %464 = vmatprep.subr.mxu0 0.0
        %465 = vmatpush1.msra.mxu0 1.0
        %466 = vmatprep.subr.mxu0 0.0
        %467 = vmatpush1.msra.mxu0 1.0
        %468 = vmatprep.subr.mxu0 0.0
        %469 = vmatpush1.msra.mxu0 1.0
        %470 = vmatprep.subr.mxu0 0.0
        %471 = vmatpush1.msra.mxu0 1.0
        %472 = vmatprep.subr.mxu0 0.0
        %473 = vmatpush1.msra.mxu0 1.0
        %474 = vmatprep.subr.mxu0 0.0
        %475 = vmatpush1.msra.mxu0 1.0
        %476 = vmatprep.subr.mxu0 0.0
        %477 = vmatpush1.msra.mxu0 1.0
        %478 = vmatprep.subr.mxu0 0.0
        %479 = vmatpush1.msra.mxu0 1.0
        %480 = vmatprep.subr.mxu0 0.0
        %481 = vmatpush1.msra.mxu0 1.0
        %482 = vmatprep.subr.mxu0 0.0
        %483 = vmatpush1.msra.mxu0 1.0
        %484 = vmatprep.subr.mxu0 0.0
        %485 = vmatpush1.msra.mxu0 1.0
        %486 = vmatprep.subr.mxu0 0.0
        %487 = vmatpush1.msra.mxu0 1.0
        %488 = vmatprep.subr.mxu0 0.0
        %489 = vmatpush1.msra.mxu0 1.0
        %490 = vmatprep.subr.mxu0 0.0
        %491 = vmatpush1.msra.mxu0 1.0
        %492 = vmatprep.subr.mxu0 0.0
        %493 = vmatpush1.msra.mxu0 1.0
        %494 = vmatprep.subr.mxu0 0.0
        %495 = vmatpush1.msra.mxu0 1.0
        %496 = vmatprep.subr.mxu0 0.0
        %497 = vmatpush1.msra.mxu0 1.0
        %498 = vmatprep.subr.mxu0 0.0
        %499 = vmatpush1.msra.mxu0 1.0
        %500 = vmatprep.subr.mxu0 0.0
        %501 = vmatpush1.msra.mxu0 1.0
        %502 = vmatprep.mubr.f32.mxu0 %v437
        %503 = vmatmul.mubr.f32.gmra.mrb[0].mxu0 %v436
        %v504 = vpop.f32.mrb[0].mxu0
        %v505 = vadd.f32 0.0, %v504
        %v506 = vpop.f32.mrb[0].mxu0
        %507 = vdwg.mxu0
        %v508 = vmin.f32 %v505, %v426
        %vm509 = vcmp.gt.f32.partialorder %v508, 0.0
        %v510 = vmul.f32 %v508, %v431
        %v511 = vsel %vm509, %v510, 0.0
        %v512 = vadd.f32 %v425, %v511
        %v513 = vsub.f32 %v426, %v508
        %v514 = vsel %vm432, -inf, %v427
        %v515 = vsel %vm433, -inf, %v428
        %v516 = vmax.f32 %v514, %v515
        %517 = vmax.xlane.f32.xlu0 %v516
        %v518 = vpop.xlane.xlu0 %517
        %vm519 = vcmp.eq.f32.partialorder %v514, %v518
        %vm520 = vcmp.eq.f32.partialorder %v515, %v518
        %v521 = vsel %vm519, 1, 0
        %v522 = vsel %vm520, 1, 0
        %v523 = vcvt.s32.f32 %v521
        %v524 = vcvt.s32.f32 %v522
        %525 = vmatprep.subr.mxu0 0.0
        %526 = vmatpush1.msra.mxu0 1.0
        %527 = vmatprep.subr.mxu0 0.0
        %528 = vmatpush1.msra.mxu0 1.0
        %529 = vmatprep.subr.mxu0 0.0
        %530 = vmatpush1.msra.mxu0 1.0
        %531 = vmatprep.subr.mxu0 0.0
        %532 = vmatpush1.msra.mxu0 1.0
        %533 = vmatprep.subr.mxu0 0.0
        %534 = vmatpush1.msra.mxu0 1.0
        %535 = vmatprep.subr.mxu0 0.0
        %536 = vmatpush1.msra.mxu0 1.0
        %537 = vmatprep.subr.mxu0 0.0
        %538 = vmatpush1.msra.mxu0 1.0
        %539 = vmatprep.subr.mxu0 0.0
        %540 = vmatpush1.msra.mxu0 1.0
        %541 = vmatprep.subr.mxu0 0.0
        %542 = vmatpush1.msra.mxu0 1.0
        %543 = vmatprep.subr.mxu0 0.0
        %544 = vmatpush1.msra.mxu0 1.0
        %545 = vmatprep.subr.mxu0 0.0
        %546 = vmatpush1.msra.mxu0 1.0
        %547 = vmatprep.subr.mxu0 0.0
        %548 = vmatpush1.msra.mxu0 1.0
        %549 = vmatprep.subr.mxu0 0.0
        %550 = vmatpush1.msra.mxu0 1.0
        %551 = vmatprep.subr.mxu0 0.0
        %552 = vmatpush1.msra.mxu0 1.0
        %553 = vmatprep.subr.mxu0 0.0
        %554 = vmatpush1.msra.mxu0 1.0
        %555 = vmatprep.subr.mxu0 0.0
        %556 = vmatpush1.msra.mxu0 1.0
        %557 = vmatprep.subr.mxu0 0.0
        %558 = vmatpush1.msra.mxu0 1.0
        %559 = vmatprep.subr.mxu0 0.0
        %560 = vmatpush1.msra.mxu0 1.0
        %561 = vmatprep.subr.mxu0 0.0
        %562 = vmatpush1.msra.mxu0 1.0
        %563 = vmatprep.subr.mxu0 0.0
        %564 = vmatpush1.msra.mxu0 1.0
        %565 = vmatprep.subr.mxu0 0.0
        %566 = vmatpush1.msra.mxu0 1.0
        %567 = vmatprep.subr.mxu0 0.0
        %568 = vmatpush1.msra.mxu0 1.0
        %569 = vmatprep.subr.mxu0 0.0
        %570 = vmatpush1.msra.mxu0 1.0
        %571 = vmatprep.subr.mxu0 0.0
        %572 = vmatpush1.msra.mxu0 1.0
        %573 = vmatprep.subr.mxu0 0.0
        %574 = vmatpush1.msra.mxu0 1.0
        %575 = vmatprep.subr.mxu0 0.0
        %576 = vmatpush1.msra.mxu0 1.0
        %577 = vmatprep.subr.mxu0 0.0
        %578 = vmatpush1.msra.mxu0 1.0
        %579 = vmatprep.subr.mxu0 0.0
        %580 = vmatpush1.msra.mxu0 1.0
        %581 = vmatprep.subr.mxu0 0.0
        %582 = vmatpush1.msra.mxu0 1.0
        %583 = vmatprep.subr.mxu0 0.0
        %584 = vmatpush1.msra.mxu0 1.0
        %585 = vmatprep.subr.mxu0 0.0
        %586 = vmatpush1.msra.mxu0 1.0
        %587 = vmatprep.subr.mxu0 0.0
        %588 = vmatpush1.msra.mxu0 1.0
        %589 = vmatprep.mubr.f32.mxu0 %v524
        %590 = vmatmul.mubr.f32.gmra.mrb[0].mxu0 %v523
        %v591 = vpop.f32.mrb[0].mxu0
        %v592 = vadd.f32 0.0, %v591
        %v593 = vpop.f32.mrb[0].mxu0
        %594 = vdwg.mxu0
        %v595 = vmin.f32 %v592, %v513
        %vm596 = vcmp.gt.f32.partialorder %v595, 0.0
        %v597 = vmul.f32 %v595, %v518
        %v598 = vsel %vm596, %v597, 0.0
        %v599 = vadd.f32 %v512, %v598
        %v600 = vsub.f32 %v513, %v595
        %v601 = vsel %vm519, -inf, %v514
        %v602 = vsel %vm520, -inf, %v515
        %v603 = vmax.f32 %v601, %v602
        %604 = vmax.xlane.f32.xlu0 %v603
        %v605 = vpop.xlane.xlu0 %604
        %vm606 = vcmp.eq.f32.partialorder %v601, %v605
        %vm607 = vcmp.eq.f32.partialorder %v602, %v605
        %v608 = vsel %vm606, 1, 0
        %v609 = vsel %vm607, 1, 0
        %v610 = vcvt.s32.f32 %v608
        %v611 = vcvt.s32.f32 %v609
        %612 = vmatprep.subr.mxu0 0.0
        %613 = vmatpush1.msra.mxu0 1.0
        %614 = vmatprep.subr.mxu0 0.0
        %615 = vmatpush1.msra.mxu0 1.0
        %616 = vmatprep.subr.mxu0 0.0
        %617 = vmatpush1.msra.mxu0 1.0
        %618 = vmatprep.subr.mxu0 0.0
        %619 = vmatpush1.msra.mxu0 1.0
        %620 = vmatprep.subr.mxu0 0.0
        %621 = vmatpush1.msra.mxu0 1.0
        %622 = vmatprep.subr.mxu0 0.0
        %623 = vmatpush1.msra.mxu0 1.0
        %624 = vmatprep.subr.mxu0 0.0
        %625 = vmatpush1.msra.mxu0 1.0
        %626 = vmatprep.subr.mxu0 0.0
        %627 = vmatpush1.msra.mxu0 1.0
        %628 = vmatprep.subr.mxu0 0.0
        %629 = vmatpush1.msra.mxu0 1.0
        %630 = vmatprep.subr.mxu0 0.0
        %631 = vmatpush1.msra.mxu0 1.0
        %632 = vmatprep.subr.mxu0 0.0
        %633 = vmatpush1.msra.mxu0 1.0
        %634 = vmatprep.subr.mxu0 0.0
        %635 = vmatpush1.msra.mxu0 1.0
        %636 = vmatprep.subr.mxu0 0.0
        %637 = vmatpush1.msra.mxu0 1.0
        %638 = vmatprep.subr.mxu0 0.0
        %639 = vmatpush1.msra.mxu0 1.0
        %640 = vmatprep.subr.mxu0 0.0
        %641 = vmatpush1.msra.mxu0 1.0
        %642 = vmatprep.subr.mxu0 0.0
        %643 = vmatpush1.msra.mxu0 1.0
        %644 = vmatprep.subr.mxu0 0.0
        %645 = vmatpush1.msra.mxu0 1.0
        %646 = vmatprep.subr.mxu0 0.0
        %647 = vmatpush1.msra.mxu0 1.0
        %648 = vmatprep.subr.mxu0 0.0
        %649 = vmatpush1.msra.mxu0 1.0
        %650 = vmatprep.subr.mxu0 0.0
        %651 = vmatpush1.msra.mxu0 1.0
        %652 = vmatprep.subr.mxu0 0.0
        %653 = vmatpush1.msra.mxu0 1.0
        %654 = vmatprep.subr.mxu0 0.0
        %655 = vmatpush1.msra.mxu0 1.0
        %656 = vmatprep.subr.mxu0 0.0
        %657 = vmatpush1.msra.mxu0 1.0
        %658 = vmatprep.subr.mxu0 0.0
        %659 = vmatpush1.msra.mxu0 1.0
        %660 = vmatprep.subr.mxu0 0.0
        %661 = vmatpush1.msra.mxu0 1.0
        %662 = vmatprep.subr.mxu0 0.0
        %663 = vmatpush1.msra.mxu0 1.0
        %664 = vmatprep.subr.mxu0 0.0
        %665 = vmatpush1.msra.mxu0 1.0
        %666 = vmatprep.subr.mxu0 0.0
        %667 = vmatpush1.msra.mxu0 1.0
        %668 = vmatprep.subr.mxu0 0.0
        %669 = vmatpush1.msra.mxu0 1.0
        %670 = vmatprep.subr.mxu0 0.0
        %671 = vmatpush1.msra.mxu0 1.0
        %672 = vmatprep.subr.mxu0 0.0
        %673 = vmatpush1.msra.mxu0 1.0
        %674 = vmatprep.subr.mxu0 0.0
        %675 = vmatpush1.msra.mxu0 1.0
        %676 = vmatprep.mubr.f32.mxu0 %v611
        %677 = vmatmul.mubr.f32.gmra.mrb[0].mxu0 %v610
        %v678 = vpop.f32.mrb[0].mxu0
        %v679 = vadd.f32 0.0, %v678
        %v680 = vpop.f32.mrb[0].mxu0
        %681 = vdwg.mxu0
        %v682 = vmin.f32 %v679, %v600
        %vm683 = vcmp.gt.f32.partialorder %v682, 0.0
        %v684 = vmul.f32 %v682, %v605
        %v685 = vsel %vm683, %v684, 0.0
        %v686 = vadd.f32 %v599, %v685
        %v687 = vld [vmem:[%s172] sm:$0xff]
        %v688 = vlaneseq
        %v689 = vand.u32 %v688, 127
        %v690 = vadd.s32 %v689, 128
        %691 = vset.pattern.permute.xlu0 0
        %692 = vperm.xlu0 %691, %v687
        %v693 = vpop.permute.xlu0 %692
        %vm694 = vcmp.eq.s32.totalorder %v689, %v693
        %vm695 = vcmp.eq.s32.totalorder %v690, %v693
        %v696 = vsel %vm694, %v177, 0.0
        %v697 = vsel %vm695, %v178, 0.0
        %698 = vmatprep.subr.mxu0 0.0
        %699 = vmatpush1.msra.mxu0 1.0
        %700 = vmatprep.subr.mxu0 0.0
        %701 = vmatpush1.msra.mxu0 1.0
        %702 = vmatprep.subr.mxu0 0.0
        %703 = vmatpush1.msra.mxu0 1.0
        %704 = vmatprep.subr.mxu0 0.0
        %705 = vmatpush1.msra.mxu0 1.0
        %706 = vmatprep.subr.mxu0 0.0
        %707 = vmatpush1.msra.mxu0 1.0
        %708 = vmatprep.subr.mxu0 0.0
        %709 = vmatpush1.msra.mxu0 1.0
        %710 = vmatprep.subr.mxu0 0.0
        %711 = vmatpush1.msra.mxu0 1.0
        %712 = vmatprep.subr.mxu0 0.0
        %713 = vmatpush1.msra.mxu0 1.0
        %714 = vmatprep.subr.mxu0 0.0
        %715 = vmatpush1.msra.mxu0 1.0
        %716 = vmatprep.subr.mxu0 0.0
        %717 = vmatpush1.msra.mxu0 1.0
        %718 = vmatprep.subr.mxu0 0.0
        %719 = vmatpush1.msra.mxu0 1.0
        %720 = vmatprep.subr.mxu0 0.0
        %721 = vmatpush1.msra.mxu0 1.0
        %722 = vmatprep.subr.mxu0 0.0
        %723 = vmatpush1.msra.mxu0 1.0
        %724 = vmatprep.subr.mxu0 0.0
        %725 = vmatpush1.msra.mxu0 1.0
        %726 = vmatprep.subr.mxu0 0.0
        %727 = vmatpush1.msra.mxu0 1.0
        %728 = vmatprep.subr.mxu0 0.0
        %729 = vmatpush1.msra.mxu0 1.0
        %730 = vmatprep.subr.mxu0 0.0
        %731 = vmatpush1.msra.mxu0 1.0
        %732 = vmatprep.subr.mxu0 0.0
        %733 = vmatpush1.msra.mxu0 1.0
        %734 = vmatprep.subr.mxu0 0.0
        %735 = vmatpush1.msra.mxu0 1.0
        %736 = vmatprep.subr.mxu0 0.0
        %737 = vmatpush1.msra.mxu0 1.0
        %738 = vmatprep.subr.mxu0 0.0
        %739 = vmatpush1.msra.mxu0 1.0
        %740 = vmatprep.subr.mxu0 0.0
        %741 = vmatpush1.msra.mxu0 1.0
        %742 = vmatprep.subr.mxu0 0.0
        %743 = vmatpush1.msra.mxu0 1.0
        %744 = vmatprep.subr.mxu0 0.0
        %745 = vmatpush1.msra.mxu0 1.0
        %746 = vmatprep.subr.mxu0 0.0
        %747 = vmatpush1.msra.mxu0 1.0
        %748 = vmatprep.subr.mxu0 0.0
        %749 = vmatpush1.msra.mxu0 1.0
        %750 = vmatprep.subr.mxu0 0.0
        %751 = vmatpush1.msra.mxu0 1.0
        %752 = vmatprep.subr.mxu0 0.0
        %753 = vmatpush1.msra.mxu0 1.0
        %754 = vmatprep.subr.mxu0 0.0
        %755 = vmatpush1.msra.mxu0 1.0
        %756 = vmatprep.subr.mxu0 0.0
        %757 = vmatpush1.msra.mxu0 1.0
        %758 = vmatprep.subr.mxu0 0.0
        %759 = vmatpush1.msra.mxu0 1.0
        %760 = vmatprep.subr.mxu0 0.0
        %761 = vmatpush1.msra.mxu0 1.0
        %762 = vmatprep.mubr.f32.mxu0 %v697
        %763 = vmatmul.mubr.f32.gmra.mrb[0].mxu0 %v696
        %v764 = vpop.f32.mrb[0].mxu0
        %v765 = vadd.f32 0.0, %v764
        %v766 = vpop.f32.mrb[0].mxu0
        %767 = vdwg.mxu0
        %v768 = vmul.f32 %v686, 0.02
        %v769 = vsub.f32 %v260, %v768
        %v770 = vmul.f32 %v765, 0.9
        %v771 = vsub.f32 %v769, %v770
        %vm772 = vcmask 7168
        %773 = vst.msk [vmem:[%s176] sm:$0xff] %vm772, %v771
        %p774 = scmp.lt.s32.totalorder %s16, 1
        %s775 = scalar_select %p774, %s16, 1
        %s776 = smul.addr %s775, 8
        %s777 = scalar_lea.vmem %s2, %s776
        // Predicated region
        $region33: #{tpu_custom_call.1} parent=27 // pred_check
          %p778 = pneg %p86
        $region34: #{tpu_custom_call.1} parent=27 // pred_check_branch
          %780 = sbr.rel (%p778) target = $region36
        $region35: #{tpu_custom_call.1} parent=27 // pred_region
          _
        $region36: #{tpu_custom_call.1} parent=27 // pred_fallthru
          _
      $region28: #{tpu_custom_call.1} parent=5 // pred_fallthru
        _
      %p781 = scmp.le.s32.totalorder 2, %s11
      // Predicated region
      $region37: #{tpu_custom_call.1} parent=5 // pred_check
        %p782 = pneg %p781
      $region38: #{tpu_custom_call.1} parent=5 // pred_check_branch
        %784 = sbr.rel (%p782) target = $region40
      $region39: #{tpu_custom_call.1} parent=5 // pred_region
        %s785 = ssub.s32 %s11, 2
        // Predicated region
        $region41: #{tpu_custom_call.1} parent=39 // pred_check
          %p786 = pneg %p92
        $region42: #{tpu_custom_call.1} parent=39 // pred_check_branch
          %788 = sbr.rel (%p786) target = $region44
        $region43: #{tpu_custom_call.1} parent=39 // pred_region
          %p789 = scmp.lt.s32.totalorder %s17, 1
          %s790 = scalar_select %p789, %s17, 1
          %s791 = smul.addr %s790, 8
          %s792 = scalar_lea.vmem %s2, %s791
        $region44: #{tpu_custom_call.1} parent=39 // pred_fallthru
          _
      $region40: #{tpu_custom_call.1} parent=5 // pred_fallthru
        _
    $region6: #{tpu_custom_call.1} parent=1 // loop_footer
      %s15 = sadd.s32 1, %s11
    $region7: #{tpu_custom_call.1} parent=1 // loop_footer_branch
      %10 = sbr.rel target = $region3
    $region8: #{tpu_custom_call.1} parent=1 // loop_exit
      _
    %793 = vsyncpa [#allocation3], 1
    %s794 = scalar_lea.sflag [#allocation3], 1
    %795 = vsyncpa %s794, 1

</llo_original>
